<compile_context>
chip_gen: v7x
topology: tpu7x:2x2x1
jax: 0.10.0
libtpu: 0.0.40
codegen_flags: <defaults>
</compile_context>

<pallas_src>
import math

import jax
import jax.numpy as jnp
from jax.experimental import pallas as pl
from jax.experimental.pallas import tpu as pltpu

_LANE = 128


# ----------------------------- Pallas kernel ---------------------------------

def _ae_mlp_kernel(x_ref, *refs):
    """Fused AE forward in a lane-dense (features x batch) layout.

    x_ref : (fin, tile_n) f32 -- batch on lanes, BN0 affine already folded into W1/b1.
    refs  : (W1, b1, ..., W6, b6, out)
            W_i : (fout_i, fin_i) bf16  (PyTorch Linear weight layout)
            b_i : (fout_i, 1)     f32
            out : (fout_6, tile_n) f32  (lane-dense store)
    """
    out_ref = refs[-1]
    wb = refs[:-1]
    n_layers = len(wb) // 2

    h = x_ref[...].astype(jnp.bfloat16)              # (fin, tile_n)
    for li in range(n_layers):                       # unrolled at trace time (6 layers)
        w = wb[2 * li][...]                          # (fout, fin) bf16
        b = wb[2 * li + 1][...]                      # (fout, 1)  f32
        h = jnp.dot(w, h, preferred_element_type=jnp.float32) + b
        if li < n_layers - 1:                        # no ReLU after the final decoder layer
            # ReLU in f32 first, then pack to bf16 (keeps v5e off bf16 VPU paths).
            h = jnp.maximum(h, 0.0).astype(jnp.bfloat16)
    out_ref[...] = h                                 # (fout, tile_n) f32, lane-dense


def _plan_tiles(n, *, max_tile=2048):
    """Pick (tile_cols, num_tiles): tile_cols is a multiple of 128; num_tiles >= 2
    whenever n > 128 so both v7x TensorCores get work (cheap no-op on v5e/v6e)."""
    if n <= _LANE:
        return _LANE, 1
    num_tiles = max(2, math.ceil(n / max_tile))
    tile = math.ceil(n / (num_tiles * _LANE)) * _LANE
    return tile, num_tiles


def ae_pallas(x, params, *, max_tile=2048):
    """Fused AE forward. x: (N, fin) f32. params: [(W (fout,fin) bf16, b (fout,1) f32)]*6.
    Returns (N, fout) f32."""
    n, fin = x.shape
    fout = params[-1][0].shape[0]
    tile, num_tiles = _plan_tiles(n, max_tile=max_tile)
    n_pad = tile * num_tiles

    # Lane-dense layout: batch axis last, zero-padded up to a multiple of the tile.
    xt = jnp.zeros((fin, n_pad), x.dtype).at[:, :n].set(x.T)

    flat_args = [xt]
    in_specs = [pl.BlockSpec((fin, tile), lambda i: (0, i))]
    for (w, b) in params:
        flat_args += [w, b]
        # Parameters total ~5 KiB: pass whole arrays; they stay VMEM-resident
        # across grid steps (constant index_map).
        in_specs.append(pl.BlockSpec(w.shape, lambda i: (0, 0)))
        in_specs.append(pl.BlockSpec(b.shape, lambda i: (0, 0)))

    out_t = pl.pallas_call(
        _ae_mlp_kernel,
        out_shape=jax.ShapeDtypeStruct((fout, n_pad), jnp.float32),
        grid=(num_tiles,),
        in_specs=in_specs,
        out_specs=pl.BlockSpec((fout, tile), lambda i: (0, i)),
        compiler_params=pltpu.CompilerParams(
            dimension_semantics=("parallel",),       # shard lane-tiles across TCs (v7x)
            vmem_limit_bytes=32 * 1024 * 1024,       # modest; safe on v7x's 64 MiB
        ),
    )(*flat_args)

    return out_t[:, :n].T                            # back to (N, fout)


# ------------------------- deterministic parameters ---------------------------

def _init_linear(key, fin, fout):
    """PyTorch nn.Linear layout: W (fout, fin), b (fout, 1), U(-1/sqrt(fin), 1/sqrt(fin))."""
    k1, k2 = jax.random.split(key)
    lim = 1.0 / math.sqrt(fin)
    w = jax.random.uniform(k1, (fout, fin), jnp.float32, -lim, lim)
    b = jax.random.uniform(k2, (fout, 1), jnp.float32, -lim, lim)
    return w, b


def _init_bn(key, f):
    """Eval-mode BatchNorm1d as an affine: y = x * scale + shift (shape (f,))."""
    k1, k2, k3 = jax.random.split(key, 3)
    gamma = 1.0 + 0.1 * jax.random.normal(k1, (f,), jnp.float32)
    beta = 0.1 * jax.random.normal(k2, (f,), jnp.float32)
    rmean = 0.1 * jax.random.normal(k3, (f,), jnp.float32)
    rvar = jnp.ones((f,), jnp.float32)
    eps = 1e-5
    scale = gamma / jnp.sqrt(rvar + eps)
    shift = beta - rmean * scale
    return scale, shift


def make_ae_params(key, input_dim=4, big_dim=32, hidden_dim=2):
    dims = [
        (input_dim, big_dim), (big_dim, big_dim), (big_dim, hidden_dim),   # encoder
        (hidden_dim, big_dim), (big_dim, big_dim), (big_dim, input_dim),   # decoder
    ]
    ks = jax.random.split(key, len(dims) + 1)
    raw = [_init_linear(ks[i], fi, fo) for i, (fi, fo) in enumerate(dims)]
    bn_scale, bn_shift = _init_bn(ks[-1], input_dim)

    # Fold input BN affine into the first Linear (W1 is (big, fin)):
    #   W1 @ (s*x + t) + b1 == (W1 * s) @ x + (W1 @ t + b1)
    w1, b1 = raw[0]
    w1_f = w1 * bn_scale[None, :]
    b1_f = w1 @ bn_shift[:, None] + b1
    folded = [(w1_f, b1_f)] + raw[1:]

    # bf16 weights for the MXU; biases stay f32.
    fused = [(w.astype(jnp.bfloat16), b) for (w, b) in folded]
    return fused, raw, bn_scale, bn_shift


# ------------------------------ pure-JAX references ---------------------------

def ae_ref_quantized(x, params):
    """Mirrors the kernel's bf16 quantization (row-major math, same result)."""
    h = x.astype(jnp.bfloat16).astype(jnp.float32)
    for i, (w, b) in enumerate(params):
        h = h @ w.astype(jnp.float32).T + b[:, 0]
        if i < len(params) - 1:
            h = jnp.maximum(h, 0.0).astype(jnp.bfloat16).astype(jnp.float32)
    return h


def ae_ref_f32(x, bn_scale, bn_shift, raw_params):
    """Exact f32 AE forward (BN applied separately, unfolded f32 weights)."""
    h = x * bn_scale[None, :] + bn_shift[None, :]
    for i, (w, b) in enumerate(raw_params):
        h = h @ w.T + b[:, 0]
        if i < len(raw_params) - 1:
            h = jnp.maximum(h, 0.0)
    return h


# ----------------------------------- main --------------------------------------

if __name__ == "__main__":
    key = jax.random.PRNGKey(0)
    input_dim, big_dim, hidden_dim = 4, 32, 2
    N = 250   # deliberately NOT a multiple of 128: exercises the zero-pad + slice path

    k_x, k_p = jax.random.split(key)
    x = jax.random.normal(k_x, (N, input_dim), jnp.float32)
    fused, raw, bn_scale, bn_shift = make_ae_params(k_p, input_dim, big_dim, hidden_dim)

    out = jax.block_until_ready(ae_pallas(x, fused))

    ref_q = jax.block_until_ready(ae_ref_quantized(x, fused))
    ref_f = jax.block_until_ready(ae_ref_f32(x, bn_scale, bn_shift, raw))

    assert out.shape == (N, input_dim), out.shape
    # tight check vs. a reference using the same bf16 quantization
    assert bool(jnp.allclose(out, ref_q, rtol=1e-3, atol=1e-3)), "mismatch vs quantized ref"
    # loose check vs. the exact f32 / unfolded-BN reference (bf16 weight rounding only)
    assert bool(jnp.allclose(out, ref_f, rtol=5e-2, atol=5e-2)), "mismatch vs f32 ref"

    print("KERNEL_OK")
</pallas_src>

<mosaic_0001>
module attributes {stable_mosaic.version = 11 : i64} {
  func.func @_ae_mlp_kernel(%arg0: i32, %arg1: memref<4x128xf32, #tpu.memory_space<vmem>>, %arg2: memref<32x4xbf16, #tpu.memory_space<vmem>>, %arg3: memref<32x1xf32, #tpu.memory_space<vmem>>, %arg4: memref<32x32xbf16, #tpu.memory_space<vmem>>, %arg5: memref<32x1xf32, #tpu.memory_space<vmem>>, %arg6: memref<2x32xbf16, #tpu.memory_space<vmem>>, %arg7: memref<2x1xf32, #tpu.memory_space<vmem>>, %arg8: memref<32x2xbf16, #tpu.memory_space<vmem>>, %arg9: memref<32x1xf32, #tpu.memory_space<vmem>>, %arg10: memref<32x32xbf16, #tpu.memory_space<vmem>>, %arg11: memref<32x1xf32, #tpu.memory_space<vmem>>, %arg12: memref<4x32xbf16, #tpu.memory_space<vmem>>, %arg13: memref<4x1xf32, #tpu.memory_space<vmem>>, %arg14: memref<4x128xf32, #tpu.memory_space<vmem>>) attributes {dimension_semantics = [#tpu.dimension_semantics<parallel>], iteration_bounds = array<i64: 2>, scalar_prefetch = 0 : i64, scratch_operands = 0 : i64, tpu.core_type = #tpu.core_type<tc>, window_params = [{transform_indices = @transform_0, window_bounds = array<i64: 4, 128>}, {pipeline_mode = #tpu.pipeline_mode<synchronous>, transform_indices = @transform_1, window_bounds = array<i64: 32, 4>}, {pipeline_mode = #tpu.pipeline_mode<synchronous>, transform_indices = @transform_2, window_bounds = array<i64: 32, 1>}, {pipeline_mode = #tpu.pipeline_mode<synchronous>, transform_indices = @transform_3, window_bounds = array<i64: 32, 32>}, {pipeline_mode = #tpu.pipeline_mode<synchronous>, transform_indices = @transform_4, window_bounds = array<i64: 32, 1>}, {pipeline_mode = #tpu.pipeline_mode<synchronous>, transform_indices = @transform_5, window_bounds = array<i64: 2, 32>}, {pipeline_mode = #tpu.pipeline_mode<synchronous>, transform_indices = @transform_6, window_bounds = array<i64: 2, 1>}, {pipeline_mode = #tpu.pipeline_mode<synchronous>, transform_indices = @transform_7, window_bounds = array<i64: 32, 2>}, {pipeline_mode = #tpu.pipeline_mode<synchronous>, transform_indices = @transform_8, window_bounds = array<i64: 32, 1>}, {pipeline_mode = #tpu.pipeline_mode<synchronous>, transform_indices = @transform_9, window_bounds = array<i64: 32, 32>}, {pipeline_mode = #tpu.pipeline_mode<synchronous>, transform_indices = @transform_10, window_bounds = array<i64: 32, 1>}, {pipeline_mode = #tpu.pipeline_mode<synchronous>, transform_indices = @transform_11, window_bounds = array<i64: 4, 32>}, {pipeline_mode = #tpu.pipeline_mode<synchronous>, transform_indices = @transform_12, window_bounds = array<i64: 4, 1>}, {transform_indices = @transform_13, window_bounds = array<i64: 4, 128>}]} {
    %c0 = arith.constant 0 : index
    %c0_0 = arith.constant 0 : index
    %0 = vector.load %arg1[%c0, %c0_0] : memref<4x128xf32, #tpu.memory_space<vmem>>, vector<4x128xf32>
    %1 = arith.truncf %0 : vector<4x128xf32> to vector<4x128xbf16>
    %c0_1 = arith.constant 0 : index
    %c0_2 = arith.constant 0 : index
    %2 = vector.load %arg2[%c0_1, %c0_2] : memref<32x4xbf16, #tpu.memory_space<vmem>>, vector<32x4xbf16>
    %c0_3 = arith.constant 0 : index
    %c0_4 = arith.constant 0 : index
    %3 = vector.load %arg3[%c0_3, %c0_4] : memref<32x1xf32, #tpu.memory_space<vmem>>, vector<32x1xf32>
    %cst = arith.constant dense<0.000000e+00> : vector<32x128xf32>
    %4 = tpu.matmul %2, %1, %cst {dimension_numbers = #tpu.dot_dimension_numbers<[1], [0], [0], [1], [0, 0, 1, 1], [], []>} : vector<32x4xbf16>, vector<4x128xbf16>, vector<32x128xf32> -> vector<32x128xf32>
    %5 = vector.broadcast %3 : vector<32x1xf32> to vector<32x128xf32>
    %6 = arith.addf %4, %5 : vector<32x128xf32>
    %cst_5 = arith.constant 0.000000e+00 : f32
    %7 = vector.broadcast %cst_5 : f32 to vector<32x128xf32>
    %8 = arith.maximumf %6, %7 : vector<32x128xf32>
    %9 = arith.truncf %8 : vector<32x128xf32> to vector<32x128xbf16>
    %c0_6 = arith.constant 0 : index
    %c0_7 = arith.constant 0 : index
    %10 = vector.load %arg4[%c0_6, %c0_7] : memref<32x32xbf16, #tpu.memory_space<vmem>>, vector<32x32xbf16>
    %c0_8 = arith.constant 0 : index
    %c0_9 = arith.constant 0 : index
    %11 = vector.load %arg5[%c0_8, %c0_9] : memref<32x1xf32, #tpu.memory_space<vmem>>, vector<32x1xf32>
    %cst_10 = arith.constant dense<0.000000e+00> : vector<32x128xf32>
    %12 = tpu.matmul %10, %9, %cst_10 {dimension_numbers = #tpu.dot_dimension_numbers<[1], [0], [0], [1], [0, 0, 1, 1], [], []>} : vector<32x32xbf16>, vector<32x128xbf16>, vector<32x128xf32> -> vector<32x128xf32>
    %13 = vector.broadcast %11 : vector<32x1xf32> to vector<32x128xf32>
    %14 = arith.addf %12, %13 : vector<32x128xf32>
    %cst_11 = arith.constant 0.000000e+00 : f32
    %15 = vector.broadcast %cst_11 : f32 to vector<32x128xf32>
    %16 = arith.maximumf %14, %15 : vector<32x128xf32>
    %17 = arith.truncf %16 : vector<32x128xf32> to vector<32x128xbf16>
    %c0_12 = arith.constant 0 : index
    %c0_13 = arith.constant 0 : index
    %18 = vector.load %arg6[%c0_12, %c0_13] : memref<2x32xbf16, #tpu.memory_space<vmem>>, vector<2x32xbf16>
    %c0_14 = arith.constant 0 : index
    %c0_15 = arith.constant 0 : index
    %19 = vector.load %arg7[%c0_14, %c0_15] : memref<2x1xf32, #tpu.memory_space<vmem>>, vector<2x1xf32>
    %cst_16 = arith.constant dense<0.000000e+00> : vector<2x128xf32>
    %20 = tpu.matmul %18, %17, %cst_16 {dimension_numbers = #tpu.dot_dimension_numbers<[1], [0], [0], [1], [0, 0, 1, 1], [], []>} : vector<2x32xbf16>, vector<32x128xbf16>, vector<2x128xf32> -> vector<2x128xf32>
    %21 = vector.broadcast %19 : vector<2x1xf32> to vector<2x128xf32>
    %22 = arith.addf %20, %21 : vector<2x128xf32>
    %cst_17 = arith.constant 0.000000e+00 : f32
    %23 = vector.broadcast %cst_17 : f32 to vector<2x128xf32>
    %24 = arith.maximumf %22, %23 : vector<2x128xf32>
    %25 = arith.truncf %24 : vector<2x128xf32> to vector<2x128xbf16>
    %c0_18 = arith.constant 0 : index
    %c0_19 = arith.constant 0 : index
    %26 = vector.load %arg8[%c0_18, %c0_19] : memref<32x2xbf16, #tpu.memory_space<vmem>>, vector<32x2xbf16>
    %c0_20 = arith.constant 0 : index
    %c0_21 = arith.constant 0 : index
    %27 = vector.load %arg9[%c0_20, %c0_21] : memref<32x1xf32, #tpu.memory_space<vmem>>, vector<32x1xf32>
    %cst_22 = arith.constant dense<0.000000e+00> : vector<32x128xf32>
    %28 = tpu.matmul %26, %25, %cst_22 {dimension_numbers = #tpu.dot_dimension_numbers<[1], [0], [0], [1], [0, 0, 1, 1], [], []>} : vector<32x2xbf16>, vector<2x128xbf16>, vector<32x128xf32> -> vector<32x128xf32>
    %29 = vector.broadcast %27 : vector<32x1xf32> to vector<32x128xf32>
    %30 = arith.addf %28, %29 : vector<32x128xf32>
    %cst_23 = arith.constant 0.000000e+00 : f32
    %31 = vector.broadcast %cst_23 : f32 to vector<32x128xf32>
    %32 = arith.maximumf %30, %31 : vector<32x128xf32>
    %33 = arith.truncf %32 : vector<32x128xf32> to vector<32x128xbf16>
    %c0_24 = arith.constant 0 : index
    %c0_25 = arith.constant 0 : index
    %34 = vector.load %arg10[%c0_24, %c0_25] : memref<32x32xbf16, #tpu.memory_space<vmem>>, vector<32x32xbf16>
    %c0_26 = arith.constant 0 : index
    %c0_27 = arith.constant 0 : index
    %35 = vector.load %arg11[%c0_26, %c0_27] : memref<32x1xf32, #tpu.memory_space<vmem>>, vector<32x1xf32>
    %cst_28 = arith.constant dense<0.000000e+00> : vector<32x128xf32>
    %36 = tpu.matmul %34, %33, %cst_28 {dimension_numbers = #tpu.dot_dimension_numbers<[1], [0], [0], [1], [0, 0, 1, 1], [], []>} : vector<32x32xbf16>, vector<32x128xbf16>, vector<32x128xf32> -> vector<32x128xf32>
    %37 = vector.broadcast %35 : vector<32x1xf32> to vector<32x128xf32>
    %38 = arith.addf %36, %37 : vector<32x128xf32>
    %cst_29 = arith.constant 0.000000e+00 : f32
    %39 = vector.broadcast %cst_29 : f32 to vector<32x128xf32>
    %40 = arith.maximumf %38, %39 : vector<32x128xf32>
    %41 = arith.truncf %40 : vector<32x128xf32> to vector<32x128xbf16>
    %c0_30 = arith.constant 0 : index
    %c0_31 = arith.constant 0 : index
    %42 = vector.load %arg12[%c0_30, %c0_31] : memref<4x32xbf16, #tpu.memory_space<vmem>>, vector<4x32xbf16>
    %c0_32 = arith.constant 0 : index
    %c0_33 = arith.constant 0 : index
    %43 = vector.load %arg13[%c0_32, %c0_33] : memref<4x1xf32, #tpu.memory_space<vmem>>, vector<4x1xf32>
    %cst_34 = arith.constant dense<0.000000e+00> : vector<4x128xf32>
    %44 = tpu.matmul %42, %41, %cst_34 {dimension_numbers = #tpu.dot_dimension_numbers<[1], [0], [0], [1], [0, 0, 1, 1], [], []>} : vector<4x32xbf16>, vector<32x128xbf16>, vector<4x128xf32> -> vector<4x128xf32>
    %45 = vector.broadcast %43 : vector<4x1xf32> to vector<4x128xf32>
    %46 = arith.addf %44, %45 : vector<4x128xf32>
    %c0_35 = arith.constant 0 : index
    %c0_36 = arith.constant 0 : index
    %47 = vector.load %arg14[%c0_35, %c0_36] : memref<4x128xf32, #tpu.memory_space<vmem>>, vector<4x128xf32>
    tpu.vector_store %arg14[%c0_35, %c0_36], %46 {strides = array<i32>} : memref<4x128xf32, #tpu.memory_space<vmem>>, vector<4x128xf32>,
    return
  }
  func.func @transform_0(%arg0: i32) -> (i32, i32) {
    %c0_i32 = arith.constant 0 : i32
    %c0_i32_0 = arith.constant 0 : i32
    return %c0_i32, %arg0 : i32, i32
  }
  func.func @transform_1(%arg0: i32) -> (i32, i32) {
    %c0_i32 = arith.constant 0 : i32
    %c0_i32_0 = arith.constant 0 : i32
    %c0_i32_1 = arith.constant 0 : i32
    return %c0_i32, %c0_i32_0 : i32, i32
  }
  func.func @transform_2(%arg0: i32) -> (i32, i32) {
    %c0_i32 = arith.constant 0 : i32
    %c0_i32_0 = arith.constant 0 : i32
    %c0_i32_1 = arith.constant 0 : i32
    return %c0_i32, %c0_i32_0 : i32, i32
  }
  func.func @transform_3(%arg0: i32) -> (i32, i32) {
    %c0_i32 = arith.constant 0 : i32
    %c0_i32_0 = arith.constant 0 : i32
    %c0_i32_1 = arith.constant 0 : i32
    return %c0_i32, %c0_i32_0 : i32, i32
  }
  func.func @transform_4(%arg0: i32) -> (i32, i32) {
    %c0_i32 = arith.constant 0 : i32
    %c0_i32_0 = arith.constant 0 : i32
    %c0_i32_1 = arith.constant 0 : i32
    return %c0_i32, %c0_i32_0 : i32, i32
  }
  func.func @transform_5(%arg0: i32) -> (i32, i32) {
    %c0_i32 = arith.constant 0 : i32
    %c0_i32_0 = arith.constant 0 : i32
    %c0_i32_1 = arith.constant 0 : i32
    return %c0_i32, %c0_i32_0 : i32, i32
  }
  func.func @transform_6(%arg0: i32) -> (i32, i32) {
    %c0_i32 = arith.constant 0 : i32
    %c0_i32_0 = arith.constant 0 : i32
    %c0_i32_1 = arith.constant 0 : i32
    return %c0_i32, %c0_i32_0 : i32, i32
  }
  func.func @transform_7(%arg0: i32) -> (i32, i32) {
    %c0_i32 = arith.constant 0 : i32
    %c0_i32_0 = arith.constant 0 : i32
    %c0_i32_1 = arith.constant 0 : i32
    return %c0_i32, %c0_i32_0 : i32, i32
  }
  func.func @transform_8(%arg0: i32) -> (i32, i32) {
    %c0_i32 = arith.constant 0 : i32
    %c0_i32_0 = arith.constant 0 : i32
    %c0_i32_1 = arith.constant 0 : i32
    return %c0_i32, %c0_i32_0 : i32, i32
  }
  func.func @transform_9(%arg0: i32) -> (i32, i32) {
    %c0_i32 = arith.constant 0 : i32
    %c0_i32_0 = arith.constant 0 : i32
    %c0_i32_1 = arith.constant 0 : i32
    return %c0_i32, %c0_i32_0 : i32, i32
  }
  func.func @transform_10(%arg0: i32) -> (i32, i32) {
    %c0_i32 = arith.constant 0 : i32
    %c0_i32_0 = arith.constant 0 : i32
    %c0_i32_1 = arith.constant 0 : i32
    return %c0_i32, %c0_i32_0 : i32, i32
  }
  func.func @transform_11(%arg0: i32) -> (i32, i32) {
    %c0_i32 = arith.constant 0 : i32
    %c0_i32_0 = arith.constant 0 : i32
    %c0_i32_1 = arith.constant 0 : i32
    return %c0_i32, %c0_i32_0 : i32, i32
  }
  func.func @transform_12(%arg0: i32) -> (i32, i32) {
    %c0_i32 = arith.constant 0 : i32
    %c0_i32_0 = arith.constant 0 : i32
    %c0_i32_1 = arith.constant 0 : i32
    return %c0_i32, %c0_i32_0 : i32, i32
  }
  func.func @transform_13(%arg0: i32) -> (i32, i32) {
    %c0_i32 = arith.constant 0 : i32
    %c0_i32_0 = arith.constant 0 : i32
    return %c0_i32, %arg0 : i32, i32
  }
}

</mosaic_0001>

<llo_original>
// kernel: tpu_custom_call.1
$region0: #{tpu_custom_call.1}
  #allocation0 [shape = 'u32[]', space=smem, size = 0x4, offset = 0x4, fixed_abs, tag = 'smem constant byte address 0x4 - core index']
  #allocation1 [shape = 'u32[144,128]{1,0:T(1,128)}', space=vmem, size = 0x12000, scoped, tag = 'internal scratch']
  %s0 = inlined_call_operand.vmem [shape: f32[4,256], index: 0, kind: input, shape index: {}]
  %s1 = inlined_call_operand.vmem [shape: bf16[32,4], index: 1, kind: input, shape index: {}]
  %s2 = inlined_call_operand.vmem [shape: f32[32,1], index: 2, kind: input, shape index: {}]
  %s3 = inlined_call_operand.vmem [shape: bf16[32,32], index: 3, kind: input, shape index: {}]
  %s4 = inlined_call_operand.vmem [shape: f32[32,1], index: 4, kind: input, shape index: {}]
  %s5 = inlined_call_operand.vmem [shape: bf16[2,32], index: 5, kind: input, shape index: {}]
  %s6 = inlined_call_operand.vmem [shape: f32[2,1], index: 6, kind: input, shape index: {}]
  %s7 = inlined_call_operand.vmem [shape: bf16[32,2], index: 7, kind: input, shape index: {}]
  %s8 = inlined_call_operand.vmem [shape: f32[32,1], index: 8, kind: input, shape index: {}]
  %s9 = inlined_call_operand.vmem [shape: bf16[32,32], index: 9, kind: input, shape index: {}]
  %s10 = inlined_call_operand.vmem [shape: f32[32,1], index: 10, kind: input, shape index: {}]
  %s11 = inlined_call_operand.vmem [shape: bf16[4,32], index: 11, kind: input, shape index: {}]
  %s12 = inlined_call_operand.vmem [shape: f32[4,1], index: 12, kind: input, shape index: {}]
  %s13 = inlined_call_operand.hbm [shape: f32[4,256], index: 13, kind: output, shape index: {}]
  %s14 = sld [smem:[#allocation0]]
  $region85: #{tpu_custom_call.1} parent=0
    _
  %s16 = ssub.s32 1, %s14
  %s17 = scalar_select 0, %s16, %s14
  $region1: #{tpu_custom_call.1} parent=0
    #allocation2 [shape = 'u8[4096]{0}', space=vmem, size = 0x1000, scoped, tag = 'output window, operand 0']
    #allocation3 [shape = 's32[2]{0}', space=sflag, size = 0x8, scoped, tag = 'scoped memory for tpu_custom_call.1']
    %18 = vsyncpa [#allocation3], 0
    %s19 = scalar_lea.sflag [#allocation3], 1
    %20 = vsyncpa %s19, 0
    loop: start=0, step=1, limit=4
    $region2: #{tpu_custom_call.1} parent=1 // loop_pre_header
      _
    $region3: #{tpu_custom_call.1} parent=1 // loop_header
      %s22 = sphi 0, %s26
      %p23 = scmp.ge.s32.totalorder %s22, 4
      %s32 = sphi 0, %s34
      %s35 = sphi 0, %s32
      %s36 = sphi 0, %s35
      %s52 = sphi 0, %s36
      %s56 = sphi 0, %s56
      %s58 = sphi 0, %s56
      %s59 = sphi 0, %s58
      %s73 = sphi 0, %s59
      %s77 = sphi 0, %s77
      %s79 = sphi 0, %s77
      %s80 = sphi 0, %s79
      %s94 = sphi 0, %s80
      %s98 = sphi 0, %s98
      %s100 = sphi 0, %s98
      %s101 = sphi 0, %s100
      %s115 = sphi 0, %s101
      %s119 = sphi 0, %s119
      %s121 = sphi 0, %s119
      %s122 = sphi 0, %s121
      %s136 = sphi 0, %s122
      %s140 = sphi 0, %s140
      %s142 = sphi 0, %s140
      %s143 = sphi 0, %s142
      %s157 = sphi 0, %s143
      %s161 = sphi 0, %s161
      %s163 = sphi 0, %s161
      %s164 = sphi 0, %s163
      %s178 = sphi 0, %s164
      %s182 = sphi 0, %s182
      %s184 = sphi 0, %s182
      %s185 = sphi 0, %s184
      %s199 = sphi 0, %s185
      %s203 = sphi 0, %s203
      %s205 = sphi 0, %s203
      %s206 = sphi 0, %s205
      %s220 = sphi 0, %s206
      %s224 = sphi 0, %s224
      %s226 = sphi 0, %s224
      %s227 = sphi 0, %s226
      %s241 = sphi 0, %s227
      %s245 = sphi 0, %s245
      %s247 = sphi 0, %s245
      %s248 = sphi 0, %s247
      %s262 = sphi 0, %s248
      %s266 = sphi 0, %s266
      %s268 = sphi 0, %s266
      %s269 = sphi 0, %s268
      %s283 = sphi 0, %s269
      %s287 = sphi 0, %s287
      %s289 = sphi 0, %s287
      %s290 = sphi 0, %s289
      %s304 = sphi 0, %s290
      %s310 = sphi 0, %s312
      %s313 = sphi 0, %s310
      %s314 = sphi 0, %s313
      %s330 = sphi 0, %s314
    $region4: #{tpu_custom_call.1} parent=1 // loop_header_branch
      %25 = sbr.rel (%p23) target = $region8
    $region5: #{tpu_custom_call.1} parent=1 // loop_body
      %s27 = ssub.s32 %s22, 1
      %s28 = ssub.s32 %s22, 2
      %s29 = sadd.s32 %s22, 1
      %s30 = ssub.s32 %s22, %s29
      %p31 = scmp.eq.s32.totalorder %s30, 0
      %s33 = sadd.s32 %s32, 1
      %s34 = scalar_select %p31, %s32, %s33
      %p37 = pneg %p31
      %p38 = scmp.eq.s32.totalorder %s22, 1
      %p39 = por %p37, %p38
      %p40 = scmp.ne.s32.totalorder %s32, %s35
      %p41 = scmp.eq.s32.totalorder %s22, 0
      %p42 = por %p40, %p41
      %p43 = scmp.ne.s32.totalorder %s32, %s35
      %p44 = scmp.eq.s32.totalorder %s27, 1
      %p45 = por %p43, %p44
      %p46 = scmp.ne.s32.totalorder %s35, %s36
      %p47 = scmp.eq.s32.totalorder %s27, 0
      %p48 = por %p46, %p47
      %p49 = scmp.ne.s32.totalorder %s35, %s36
      %p50 = scmp.eq.s32.totalorder %s28, 1
      %p51 = por %p49, %p50
      %p53 = scmp.ne.s32.totalorder %s36, %s52
      %p54 = scmp.eq.s32.totalorder %s28, 0
      %p55 = por %p53, %p54
      %s57 = sadd.s32 %s56, 1
      %p60 = scmp.eq.s32.totalorder %s22, 1
      %p61 = scmp.ne.s32.totalorder %s56, %s58
      %p62 = scmp.eq.s32.totalorder %s22, 0
      %p63 = por %p61, %p62
      %p64 = scmp.ne.s32.totalorder %s56, %s58
      %p65 = scmp.eq.s32.totalorder %s27, 1
      %p66 = por %p64, %p65
      %p67 = scmp.ne.s32.totalorder %s58, %s59
      %p68 = scmp.eq.s32.totalorder %s27, 0
      %p69 = por %p67, %p68
      %p70 = scmp.ne.s32.totalorder %s58, %s59
      %p71 = scmp.eq.s32.totalorder %s28, 1
      %p72 = por %p70, %p71
      %p74 = scmp.ne.s32.totalorder %s59, %s73
      %p75 = scmp.eq.s32.totalorder %s28, 0
      %p76 = por %p74, %p75
      %s78 = sadd.s32 %s77, 1
      %p81 = scmp.eq.s32.totalorder %s22, 1
      %p82 = scmp.ne.s32.totalorder %s77, %s79
      %p83 = scmp.eq.s32.totalorder %s22, 0
      %p84 = por %p82, %p83
      %p85 = scmp.ne.s32.totalorder %s77, %s79
      %p86 = scmp.eq.s32.totalorder %s27, 1
      %p87 = por %p85, %p86
      %p88 = scmp.ne.s32.totalorder %s79, %s80
      %p89 = scmp.eq.s32.totalorder %s27, 0
      %p90 = por %p88, %p89
      %p91 = scmp.ne.s32.totalorder %s79, %s80
      %p92 = scmp.eq.s32.totalorder %s28, 1
      %p93 = por %p91, %p92
      %p95 = scmp.ne.s32.totalorder %s80, %s94
      %p96 = scmp.eq.s32.totalorder %s28, 0
      %p97 = por %p95, %p96
      %s99 = sadd.s32 %s98, 1
      %p102 = scmp.eq.s32.totalorder %s22, 1
      %p103 = scmp.ne.s32.totalorder %s98, %s100
      %p104 = scmp.eq.s32.totalorder %s22, 0
      %p105 = por %p103, %p104
      %p106 = scmp.ne.s32.totalorder %s98, %s100
      %p107 = scmp.eq.s32.totalorder %s27, 1
      %p108 = por %p106, %p107
      %p109 = scmp.ne.s32.totalorder %s100, %s101
      %p110 = scmp.eq.s32.totalorder %s27, 0
      %p111 = por %p109, %p110
      %p112 = scmp.ne.s32.totalorder %s100, %s101
      %p113 = scmp.eq.s32.totalorder %s28, 1
      %p114 = por %p112, %p113
      %p116 = scmp.ne.s32.totalorder %s101, %s115
      %p117 = scmp.eq.s32.totalorder %s28, 0
      %p118 = por %p116, %p117
      %s120 = sadd.s32 %s119, 1
      %p123 = scmp.eq.s32.totalorder %s22, 1
      %p124 = scmp.ne.s32.totalorder %s119, %s121
      %p125 = scmp.eq.s32.totalorder %s22, 0
      %p126 = por %p124, %p125
      %p127 = scmp.ne.s32.totalorder %s119, %s121
      %p128 = scmp.eq.s32.totalorder %s27, 1
      %p129 = por %p127, %p128
      %p130 = scmp.ne.s32.totalorder %s121, %s122
      %p131 = scmp.eq.s32.totalorder %s27, 0
      %p132 = por %p130, %p131
      %p133 = scmp.ne.s32.totalorder %s121, %s122
      %p134 = scmp.eq.s32.totalorder %s28, 1
      %p135 = por %p133, %p134
      %p137 = scmp.ne.s32.totalorder %s122, %s136
      %p138 = scmp.eq.s32.totalorder %s28, 0
      %p139 = por %p137, %p138
      %s141 = sadd.s32 %s140, 1
      %p144 = scmp.eq.s32.totalorder %s22, 1
      %p145 = scmp.ne.s32.totalorder %s140, %s142
      %p146 = scmp.eq.s32.totalorder %s22, 0
      %p147 = por %p145, %p146
      %p148 = scmp.ne.s32.totalorder %s140, %s142
      %p149 = scmp.eq.s32.totalorder %s27, 1
      %p150 = por %p148, %p149
      %p151 = scmp.ne.s32.totalorder %s142, %s143
      %p152 = scmp.eq.s32.totalorder %s27, 0
      %p153 = por %p151, %p152
      %p154 = scmp.ne.s32.totalorder %s142, %s143
      %p155 = scmp.eq.s32.totalorder %s28, 1
      %p156 = por %p154, %p155
      %p158 = scmp.ne.s32.totalorder %s143, %s157
      %p159 = scmp.eq.s32.totalorder %s28, 0
      %p160 = por %p158, %p159
      %s162 = sadd.s32 %s161, 1
      %p165 = scmp.eq.s32.totalorder %s22, 1
      %p166 = scmp.ne.s32.totalorder %s161, %s163
      %p167 = scmp.eq.s32.totalorder %s22, 0
      %p168 = por %p166, %p167
      %p169 = scmp.ne.s32.totalorder %s161, %s163
      %p170 = scmp.eq.s32.totalorder %s27, 1
      %p171 = por %p169, %p170
      %p172 = scmp.ne.s32.totalorder %s163, %s164
      %p173 = scmp.eq.s32.totalorder %s27, 0
      %p174 = por %p172, %p173
      %p175 = scmp.ne.s32.totalorder %s163, %s164
      %p176 = scmp.eq.s32.totalorder %s28, 1
      %p177 = por %p175, %p176
      %p179 = scmp.ne.s32.totalorder %s164, %s178
      %p180 = scmp.eq.s32.totalorder %s28, 0
      %p181 = por %p179, %p180
      %s183 = sadd.s32 %s182, 1
      %p186 = scmp.eq.s32.totalorder %s22, 1
      %p187 = scmp.ne.s32.totalorder %s182, %s184
      %p188 = scmp.eq.s32.totalorder %s22, 0
      %p189 = por %p187, %p188
      %p190 = scmp.ne.s32.totalorder %s182, %s184
      %p191 = scmp.eq.s32.totalorder %s27, 1
      %p192 = por %p190, %p191
      %p193 = scmp.ne.s32.totalorder %s184, %s185
      %p194 = scmp.eq.s32.totalorder %s27, 0
      %p195 = por %p193, %p194
      %p196 = scmp.ne.s32.totalorder %s184, %s185
      %p197 = scmp.eq.s32.totalorder %s28, 1
      %p198 = por %p196, %p197
      %p200 = scmp.ne.s32.totalorder %s185, %s199
      %p201 = scmp.eq.s32.totalorder %s28, 0
      %p202 = por %p200, %p201
      %s204 = sadd.s32 %s203, 1
      %p207 = scmp.eq.s32.totalorder %s22, 1
      %p208 = scmp.ne.s32.totalorder %s203, %s205
      %p209 = scmp.eq.s32.totalorder %s22, 0
      %p210 = por %p208, %p209
      %p211 = scmp.ne.s32.totalorder %s203, %s205
      %p212 = scmp.eq.s32.totalorder %s27, 1
      %p213 = por %p211, %p212
      %p214 = scmp.ne.s32.totalorder %s205, %s206
      %p215 = scmp.eq.s32.totalorder %s27, 0
      %p216 = por %p214, %p215
      %p217 = scmp.ne.s32.totalorder %s205, %s206
      %p218 = scmp.eq.s32.totalorder %s28, 1
      %p219 = por %p217, %p218
      %p221 = scmp.ne.s32.totalorder %s206, %s220
      %p222 = scmp.eq.s32.totalorder %s28, 0
      %p223 = por %p221, %p222
      %s225 = sadd.s32 %s224, 1
      %p228 = scmp.eq.s32.totalorder %s22, 1
      %p229 = scmp.ne.s32.totalorder %s224, %s226
      %p230 = scmp.eq.s32.totalorder %s22, 0
      %p231 = por %p229, %p230
      %p232 = scmp.ne.s32.totalorder %s224, %s226
      %p233 = scmp.eq.s32.totalorder %s27, 1
      %p234 = por %p232, %p233
      %p235 = scmp.ne.s32.totalorder %s226, %s227
      %p236 = scmp.eq.s32.totalorder %s27, 0
      %p237 = por %p235, %p236
      %p238 = scmp.ne.s32.totalorder %s226, %s227
      %p239 = scmp.eq.s32.totalorder %s28, 1
      %p240 = por %p238, %p239
      %p242 = scmp.ne.s32.totalorder %s227, %s241
      %p243 = scmp.eq.s32.totalorder %s28, 0
      %p244 = por %p242, %p243
      %s246 = sadd.s32 %s245, 1
      %p249 = scmp.eq.s32.totalorder %s22, 1
      %p250 = scmp.ne.s32.totalorder %s245, %s247
      %p251 = scmp.eq.s32.totalorder %s22, 0
      %p252 = por %p250, %p251
      %p253 = scmp.ne.s32.totalorder %s245, %s247
      %p254 = scmp.eq.s32.totalorder %s27, 1
      %p255 = por %p253, %p254
      %p256 = scmp.ne.s32.totalorder %s247, %s248
      %p257 = scmp.eq.s32.totalorder %s27, 0
      %p258 = por %p256, %p257
      %p259 = scmp.ne.s32.totalorder %s247, %s248
      %p260 = scmp.eq.s32.totalorder %s28, 1
      %p261 = por %p259, %p260
      %p263 = scmp.ne.s32.totalorder %s248, %s262
      %p264 = scmp.eq.s32.totalorder %s28, 0
      %p265 = por %p263, %p264
      %s267 = sadd.s32 %s266, 1
      %p270 = scmp.eq.s32.totalorder %s22, 1
      %p271 = scmp.ne.s32.totalorder %s266, %s268
      %p272 = scmp.eq.s32.totalorder %s22, 0
      %p273 = por %p271, %p272
      %p274 = scmp.ne.s32.totalorder %s266, %s268
      %p275 = scmp.eq.s32.totalorder %s27, 1
      %p276 = por %p274, %p275
      %p277 = scmp.ne.s32.totalorder %s268, %s269
      %p278 = scmp.eq.s32.totalorder %s27, 0
      %p279 = por %p277, %p278
      %p280 = scmp.ne.s32.totalorder %s268, %s269
      %p281 = scmp.eq.s32.totalorder %s28, 1
      %p282 = por %p280, %p281
      %p284 = scmp.ne.s32.totalorder %s269, %s283
      %p285 = scmp.eq.s32.totalorder %s28, 0
      %p286 = por %p284, %p285
      %s288 = sadd.s32 %s287, 1
      %p291 = scmp.eq.s32.totalorder %s22, 1
      %p292 = scmp.ne.s32.totalorder %s287, %s289
      %p293 = scmp.eq.s32.totalorder %s22, 0
      %p294 = por %p292, %p293
      %p295 = scmp.ne.s32.totalorder %s287, %s289
      %p296 = scmp.eq.s32.totalorder %s27, 1
      %p297 = por %p295, %p296
      %p298 = scmp.ne.s32.totalorder %s289, %s290
      %p299 = scmp.eq.s32.totalorder %s27, 0
      %p300 = por %p298, %p299
      %p301 = scmp.ne.s32.totalorder %s289, %s290
      %p302 = scmp.eq.s32.totalorder %s28, 1
      %p303 = por %p301, %p302
      %p305 = scmp.ne.s32.totalorder %s290, %s304
      %p306 = scmp.eq.s32.totalorder %s28, 0
      %p307 = por %p305, %p306
      %s308 = ssub.s32 %s22, %s29
      %p309 = scmp.eq.s32.totalorder %s308, 0
      %s311 = sadd.s32 %s310, 1
      %s312 = scalar_select %p309, %s310, %s311
      %p315 = pneg %p309
      %p316 = scmp.eq.s32.totalorder %s22, 1
      %p317 = por %p315, %p316
      %p318 = scmp.ne.s32.totalorder %s310, %s313
      %p319 = scmp.eq.s32.totalorder %s22, 0
      %p320 = por %p318, %p319
      %p321 = scmp.ne.s32.totalorder %s310, %s313
      %p322 = scmp.eq.s32.totalorder %s27, 1
      %p323 = por %p321, %p322
      %p324 = scmp.ne.s32.totalorder %s313, %s314
      %p325 = scmp.eq.s32.totalorder %s27, 0
      %p326 = por %p324, %p325
      %p327 = scmp.ne.s32.totalorder %s313, %s314
      %p328 = scmp.eq.s32.totalorder %s28, 1
      %p329 = por %p327, %p328
      %p331 = scmp.ne.s32.totalorder %s314, %s330
      %p332 = scmp.eq.s32.totalorder %s28, 0
      %p333 = por %p331, %p332
      %p334 = scmp.le.s32.totalorder 1, %s22
      %p335 = scmp.lt.s32.totalorder %s22, 3
      %p336 = pnand %p334, %p335
      %p337 = pneg %p336
      // Predicated region
      $region9: #{tpu_custom_call.1} parent=5 // pred_check
        _
      $region10: #{tpu_custom_call.1} parent=5 // pred_check_branch
        %339 = sbr.rel (%p336) target = $region12
      $region11: #{tpu_custom_call.1} parent=5 // pred_region
        %s340 = ssub.s32 %s22, 1
        // Predicated region
        $region13: #{tpu_custom_call.1} parent=11 // pred_check
          %p341 = pneg %p69
        $region14: #{tpu_custom_call.1} parent=11 // pred_check_branch
          %343 = sbr.rel (%p341) target = $region16
        $region15: #{tpu_custom_call.1} parent=11 // pred_region
          _
        $region16: #{tpu_custom_call.1} parent=11 // pred_fallthru
          _
        // Predicated region
        $region17: #{tpu_custom_call.1} parent=11 // pred_check
          %p344 = pneg %p90
        $region18: #{tpu_custom_call.1} parent=11 // pred_check_branch
          %346 = sbr.rel (%p344) target = $region20
        $region19: #{tpu_custom_call.1} parent=11 // pred_region
          _
        $region20: #{tpu_custom_call.1} parent=11 // pred_fallthru
          _
        // Predicated region
        $region21: #{tpu_custom_call.1} parent=11 // pred_check
          %p347 = pneg %p111
        $region22: #{tpu_custom_call.1} parent=11 // pred_check_branch
          %349 = sbr.rel (%p347) target = $region24
        $region23: #{tpu_custom_call.1} parent=11 // pred_region
          _
        $region24: #{tpu_custom_call.1} parent=11 // pred_fallthru
          _
        // Predicated region
        $region25: #{tpu_custom_call.1} parent=11 // pred_check
          %p350 = pneg %p132
        $region26: #{tpu_custom_call.1} parent=11 // pred_check_branch
          %352 = sbr.rel (%p350) target = $region28
        $region27: #{tpu_custom_call.1} parent=11 // pred_region
          _
        $region28: #{tpu_custom_call.1} parent=11 // pred_fallthru
          _
        // Predicated region
        $region29: #{tpu_custom_call.1} parent=11 // pred_check
          %p353 = pneg %p153
        $region30: #{tpu_custom_call.1} parent=11 // pred_check_branch
          %355 = sbr.rel (%p353) target = $region32
        $region31: #{tpu_custom_call.1} parent=11 // pred_region
          _
        $region32: #{tpu_custom_call.1} parent=11 // pred_fallthru
          _
        // Predicated region
        $region33: #{tpu_custom_call.1} parent=11 // pred_check
          %p356 = pneg %p174
        $region34: #{tpu_custom_call.1} parent=11 // pred_check_branch
          %358 = sbr.rel (%p356) target = $region36
        $region35: #{tpu_custom_call.1} parent=11 // pred_region
          _
        $region36: #{tpu_custom_call.1} parent=11 // pred_fallthru
          _
        // Predicated region
        $region37: #{tpu_custom_call.1} parent=11 // pred_check
          %p359 = pneg %p195
        $region38: #{tpu_custom_call.1} parent=11 // pred_check_branch
          %361 = sbr.rel (%p359) target = $region40
        $region39: #{tpu_custom_call.1} parent=11 // pred_region
          _
        $region40: #{tpu_custom_call.1} parent=11 // pred_fallthru
          _
        // Predicated region
        $region41: #{tpu_custom_call.1} parent=11 // pred_check
          %p362 = pneg %p216
        $region42: #{tpu_custom_call.1} parent=11 // pred_check_branch
          %364 = sbr.rel (%p362) target = $region44
        $region43: #{tpu_custom_call.1} parent=11 // pred_region
          _
        $region44: #{tpu_custom_call.1} parent=11 // pred_fallthru
          _
        // Predicated region
        $region45: #{tpu_custom_call.1} parent=11 // pred_check
          %p365 = pneg %p237
        $region46: #{tpu_custom_call.1} parent=11 // pred_check_branch
          %367 = sbr.rel (%p365) target = $region48
        $region47: #{tpu_custom_call.1} parent=11 // pred_region
          _
        $region48: #{tpu_custom_call.1} parent=11 // pred_fallthru
          _
        // Predicated region
        $region49: #{tpu_custom_call.1} parent=11 // pred_check
          %p368 = pneg %p258
        $region50: #{tpu_custom_call.1} parent=11 // pred_check_branch
          %370 = sbr.rel (%p368) target = $region52
        $region51: #{tpu_custom_call.1} parent=11 // pred_region
          _
        $region52: #{tpu_custom_call.1} parent=11 // pred_fallthru
          _
        // Predicated region
        $region53: #{tpu_custom_call.1} parent=11 // pred_check
          %p371 = pneg %p279
        $region54: #{tpu_custom_call.1} parent=11 // pred_check_branch
          %373 = sbr.rel (%p371) target = $region56
        $region55: #{tpu_custom_call.1} parent=11 // pred_region
          _
        $region56: #{tpu_custom_call.1} parent=11 // pred_fallthru
          _
        // Predicated region
        $region57: #{tpu_custom_call.1} parent=11 // pred_check
          %p374 = pneg %p300
        $region58: #{tpu_custom_call.1} parent=11 // pred_check_branch
          %376 = sbr.rel (%p374) target = $region60
        $region59: #{tpu_custom_call.1} parent=11 // pred_region
          _
        $region60: #{tpu_custom_call.1} parent=11 // pred_fallthru
          _
      $region12: #{tpu_custom_call.1} parent=5 // pred_fallthru
        _
      %p377 = scmp.lt.s32.totalorder %s22, 2
      // Predicated region
      $region61: #{tpu_custom_call.1} parent=5 // pred_check
        %p378 = pneg %p377
      $region62: #{tpu_custom_call.1} parent=5 // pred_check_branch
        %380 = sbr.rel (%p378) target = $region64
      $region63: #{tpu_custom_call.1} parent=5 // pred_region
        // Predicated region
        $region65: #{tpu_custom_call.1} parent=63 // pred_check
          %p381 = pneg %p42
        $region66: #{tpu_custom_call.1} parent=63 // pred_check_branch
          %383 = sbr.rel (%p381) target = $region68
        $region67: #{tpu_custom_call.1} parent=63 // pred_region
          %p384 = scmp.lt.s32.totalorder %s22, 1
          %s385 = scalar_select %p384, %s22, 1
          %s386 = smul.addr %s385, 4
          %s387 = scalar_lea.vmem %s0, %s386
        $region68: #{tpu_custom_call.1} parent=63 // pred_fallthru
          _
      $region64: #{tpu_custom_call.1} parent=5 // pred_fallthru
        _
      %p388 = scmp.le.s32.totalorder 1, %s22
      %p389 = scmp.lt.s32.totalorder %s22, 3
      %p390 = pnand %p388, %p389
      %p391 = pneg %p390
      // Predicated region
      $region69: #{tpu_custom_call.1} parent=5 // pred_check
        _
      $region70: #{tpu_custom_call.1} parent=5 // pred_check_branch
        %393 = sbr.rel (%p390) target = $region72
      $region71: #{tpu_custom_call.1} parent=5 // pred_region
        %s394 = ssub.s32 %s22, 1
        %p395 = scmp.lt.s32.totalorder %s27, 1
        %s396 = scalar_select %p395, %s27, 1
        %s397 = smul.addr %s396, 4
        %s398 = scalar_lea.vmem %s0, %s397
        %p399 = pneg %p48
        %p400 = pneg %p45
        %p401 = pneg %p69
        %p402 = pneg %p66
        %p403 = pneg %p90
        %p404 = pneg %p87
        %p405 = pneg %p111
        %p406 = pneg %p108
        %p407 = pneg %p132
        %p408 = pneg %p129
        %p409 = pneg %p153
        %p410 = pneg %p150
        %p411 = pneg %p174
        %p412 = pneg %p171
        %p413 = pneg %p195
        %p414 = pneg %p192
        %p415 = pneg %p216
        %p416 = pneg %p213
        %p417 = pneg %p237
        %p418 = pneg %p234
        %p419 = pneg %p258
        %p420 = pneg %p255
        %p421 = pneg %p279
        %p422 = pneg %p276
        %p423 = pneg %p300
        %p424 = pneg %p297
        %p425 = pneg %p326
        %p426 = pneg %p323
        %s427 = sand.u32 %s313, 1
        %s428 = scalar_lea.sflag [#allocation3], %s427
        %s429 = sand.u32 %s313, 1
        %s430 = smul.addr %s429, 4
        %s431 = scalar_lea.vmem [#allocation2], %s430
        %p432 = scmp.lt.s32.totalorder %s27, 1
        %s433 = scalar_select %p432, %s27, 1
        %s434 = smul.addr %s433, 4
        %s435 = scalar_lea.vmem %s0, %s434
        %v437 = vld [vmem:[%s435] sm:$0xf]
        %v438 = vpack.c.bf16 %v437, %v437
        %v439 = vld [vmem:[%s1] sm:$0xf]
        %v440 = vld [vmem:[%s1 + $0x4] sm:$0xf]
        %v441 = vld [vmem:[%s1 + $0x8] sm:$0xf]
        %v442 = vld [vmem:[%s1 + $0xc] sm:$0xf]
        %v443 = vld [vmem:[%s2] sm:$0xff]
        %v444 = vld [vmem:[%s2 + $0x8] sm:$0xff]
        %v445 = vld [vmem:[%s2 + $0x10] sm:$0xff]
        %v446 = vld [vmem:[%s2 + $0x18] sm:$0xff]
        %448 = vset.pattern.permute.xlu0 0
        %449 = vperm.xlu0 %448, %v443
        %v450 = vpop.permute.xlu0 %449
        %453 = vset.pattern.permute.xlu0 0
        %454 = vperm.xlu0 %453, %v444
        %v455 = vpop.permute.xlu0 %454
        %458 = vset.pattern.permute.xlu0 0
        %459 = vperm.xlu0 %458, %v445
        %v460 = vpop.permute.xlu0 %459
        %463 = vset.pattern.permute.xlu0 0
        %464 = vperm.xlu0 %463, %v446
        %v465 = vpop.permute.xlu0 %464
        %v471 = vunpack.c.l.b16 %v439
        %v472 = vunpack.c.l.b16 %v440
        %v473 = vunpack.c.l.b16 %v441
        %v474 = vunpack.c.l.b16 %v442
        %v475 = vpack.c.b16 %v472, %v471
        %v476 = vpack.c.b16 %v474, %v473
        %vm477 = vcmask 31744
        %v479 = vsel %vm477, %v475, 0
        %v482 = vsel %vm477, %v476, 0
        %vm484 = vcmask 1041408
        %v486 = vsel %vm484, %v438, 0
        %488 = vmatprep.subr.bf16.mxu0 0
        %489 = vmatpush1.bf16.msra.mxu0 %v486
        %490 = vmatprep.subr.bf16.mxu0 0
        %491 = vmatpush1.bf16.msra.mxu0 0
        %492 = vmatprep.subr.bf16.mxu0 0
        %493 = vmatpush1.bf16.msra.mxu0 0
        %494 = vmatprep.subr.bf16.mxu0 0
        %495 = vmatpush1.bf16.msra.mxu0 0
        %496 = vmatprep.subr.bf16.mxu0 0
        %497 = vmatpush1.bf16.msra.mxu0 0
        %498 = vmatprep.subr.bf16.mxu0 0
        %499 = vmatpush1.bf16.msra.mxu0 0
        %500 = vmatprep.subr.bf16.mxu0 0
        %501 = vmatpush1.bf16.msra.mxu0 0
        %502 = vmatprep.subr.bf16.mxu0 0
        %503 = vmatpush1.bf16.msra.mxu0 0
        %504 = vmatprep.subr.bf16.mxu0 0
        %505 = vmatpush1.bf16.msra.mxu0 0
        %506 = vmatprep.subr.bf16.mxu0 0
        %507 = vmatpush1.bf16.msra.mxu0 0
        %508 = vmatprep.subr.bf16.mxu0 0
        %509 = vmatpush1.bf16.msra.mxu0 0
        %510 = vmatprep.subr.bf16.mxu0 0
        %511 = vmatpush1.bf16.msra.mxu0 0
        %512 = vmatprep.subr.bf16.mxu0 0
        %513 = vmatpush1.bf16.msra.mxu0 0
        %514 = vmatprep.subr.bf16.mxu0 0
        %515 = vmatpush1.bf16.msra.mxu0 0
        %516 = vmatprep.subr.bf16.mxu0 0
        %517 = vmatpush1.bf16.msra.mxu0 0
        %518 = vmatprep.subr.bf16.mxu0 0
        %519 = vmatpush1.bf16.msra.mxu0 0
        %520 = vmatprep.mubr.bf16.mxu0 0
        %521 = vmatmul.mubr.bf16.gmra.mrb[0].mxu0 %v479
        %v522 = vpop.f32.mrb[0].mxu0
        %v523 = vadd.f32 %v450, %v522
        %v524 = vpop.f32.mrb[0].mxu0
        %v525 = vpop.f32.mrb[0].mxu0
        %v526 = vadd.f32 %v455, %v525
        %v527 = vpop.f32.mrb[0].mxu0
        %528 = vmatprep.mubr.bf16.mxu0 0
        %529 = vmatmul.mubr.bf16.gmra.mrb[0].mxu0 %v482
        %v530 = vpop.f32.mrb[0].mxu0
        %v531 = vadd.f32 %v460, %v530
        %v532 = vpop.f32.mrb[0].mxu0
        %v533 = vpop.f32.mrb[0].mxu0
        %v534 = vadd.f32 %v465, %v533
        %v535 = vpop.f32.mrb[0].mxu0
        %536 = vdwg.mxu0
        %v537 = vmax.f32 %v523, 0.0
        %v538 = vmax.f32 %v526, 0.0
        %v539 = vmax.f32 %v531, 0.0
        %v540 = vmax.f32 %v534, 0.0
        %v541 = vpack.c.bf16 %v538, %v537
        %v542 = vpack.c.bf16 %v540, %v539
        %v543 = vld [vmem:[%s3] sm:$0xf]
        %v544 = vld [vmem:[%s3 + $0x4] sm:$0xf]
        %v545 = vld [vmem:[%s3 + $0x8] sm:$0xf]
        %v546 = vld [vmem:[%s3 + $0xc] sm:$0xf]
        %v547 = vld [vmem:[%s4] sm:$0xff]
        %v548 = vld [vmem:[%s4 + $0x8] sm:$0xff]
        %v549 = vld [vmem:[%s4 + $0x10] sm:$0xff]
        %v550 = vld [vmem:[%s4 + $0x18] sm:$0xff]
        %552 = vset.pattern.permute.xlu0 0
        %553 = vperm.xlu0 %552, %v547
        %v554 = vpop.permute.xlu0 %553
        %557 = vset.pattern.permute.xlu0 0
        %558 = vperm.xlu0 %557, %v548
        %v559 = vpop.permute.xlu0 %558
        %562 = vset.pattern.permute.xlu0 0
        %563 = vperm.xlu0 %562, %v549
        %v564 = vpop.permute.xlu0 %563
        %567 = vset.pattern.permute.xlu0 0
        %568 = vperm.xlu0 %567, %v550
        %v569 = vpop.permute.xlu0 %568
        %v575 = vunpack.c.l.b16 %v543
        %v576 = vunpack.c.l.b16 %v544
        %v577 = vunpack.c.l.b16 %v545
        %v578 = vunpack.c.l.b16 %v546
        %v579 = vpack.c.b16 %v576, %v575
        %v580 = vpack.c.b16 %v578, %v577
        %vm581 = vcmask 261120
        %v583 = vsel %vm581, %v579, 0
        %v586 = vsel %vm581, %v580, 0
        %588 = vmatprep.subr.bf16.mxu0 0
        %589 = vmatpush1.bf16.msra.mxu0 %v541
        %590 = vmatprep.subr.bf16.mxu0 0
        %591 = vmatpush1.bf16.msra.mxu0 %v542
        %592 = vmatprep.subr.bf16.mxu0 0
        %593 = vmatpush1.bf16.msra.mxu0 0
        %594 = vmatprep.subr.bf16.mxu0 0
        %595 = vmatpush1.bf16.msra.mxu0 0
        %596 = vmatprep.subr.bf16.mxu0 0
        %597 = vmatpush1.bf16.msra.mxu0 0
        %598 = vmatprep.subr.bf16.mxu0 0
        %599 = vmatpush1.bf16.msra.mxu0 0
        %600 = vmatprep.subr.bf16.mxu0 0
        %601 = vmatpush1.bf16.msra.mxu0 0
        %602 = vmatprep.subr.bf16.mxu0 0
        %603 = vmatpush1.bf16.msra.mxu0 0
        %604 = vmatprep.subr.bf16.mxu0 0
        %605 = vmatpush1.bf16.msra.mxu0 0
        %606 = vmatprep.subr.bf16.mxu0 0
        %607 = vmatpush1.bf16.msra.mxu0 0
        %608 = vmatprep.subr.bf16.mxu0 0
        %609 = vmatpush1.bf16.msra.mxu0 0
        %610 = vmatprep.subr.bf16.mxu0 0
        %611 = vmatpush1.bf16.msra.mxu0 0
        %612 = vmatprep.subr.bf16.mxu0 0
        %613 = vmatpush1.bf16.msra.mxu0 0
        %614 = vmatprep.subr.bf16.mxu0 0
        %615 = vmatpush1.bf16.msra.mxu0 0
        %616 = vmatprep.subr.bf16.mxu0 0
        %617 = vmatpush1.bf16.msra.mxu0 0
        %618 = vmatprep.subr.bf16.mxu0 0
        %619 = vmatpush1.bf16.msra.mxu0 0
        %620 = vmatprep.mubr.bf16.mxu0 0
        %621 = vmatmul.mubr.bf16.gmra.mrb[0].mxu0 %v583
        %v622 = vpop.f32.mrb[0].mxu0
        %v623 = vadd.f32 %v554, %v622
        %v624 = vpop.f32.mrb[0].mxu0
        %v625 = vpop.f32.mrb[0].mxu0
        %v626 = vadd.f32 %v559, %v625
        %v627 = vpop.f32.mrb[0].mxu0
        %628 = vmatprep.mubr.bf16.mxu0 0
        %629 = vmatmul.mubr.bf16.gmra.mrb[0].mxu0 %v586
        %v630 = vpop.f32.mrb[0].mxu0
        %v631 = vadd.f32 %v564, %v630
        %v632 = vpop.f32.mrb[0].mxu0
        %v633 = vpop.f32.mrb[0].mxu0
        %v634 = vadd.f32 %v569, %v633
        %v635 = vpop.f32.mrb[0].mxu0
        %636 = vdwg.mxu0
        %v637 = vmax.f32 %v623, 0.0
        %v638 = vmax.f32 %v626, 0.0
        %v639 = vmax.f32 %v631, 0.0
        %v640 = vmax.f32 %v634, 0.0
        %v641 = vpack.c.bf16 %v638, %v637
        %v642 = vpack.c.bf16 %v640, %v639
        %v643 = vld [vmem:[%s5] sm:$0x1]
        %v644 = vld [vmem:[%s6] sm:$0x3]
        %646 = vset.pattern.permute.xlu0 0
        %647 = vperm.xlu0 %646, %v644
        %v648 = vpop.permute.xlu0 %647
        %v651 = vsel %vm581, %v643, 0
        %653 = vmatprep.subr.bf16.mxu0 0
        %654 = vmatpush1.bf16.msra.mxu0 %v641
        %655 = vmatprep.subr.bf16.mxu0 0
        %656 = vmatpush1.bf16.msra.mxu0 %v642
        %657 = vmatprep.subr.bf16.mxu0 0
        %658 = vmatpush1.bf16.msra.mxu0 0
        %659 = vmatprep.subr.bf16.mxu0 0
        %660 = vmatpush1.bf16.msra.mxu0 0
        %661 = vmatprep.subr.bf16.mxu0 0
        %662 = vmatpush1.bf16.msra.mxu0 0
        %663 = vmatprep.subr.bf16.mxu0 0
        %664 = vmatpush1.bf16.msra.mxu0 0
        %665 = vmatprep.subr.bf16.mxu0 0
        %666 = vmatpush1.bf16.msra.mxu0 0
        %667 = vmatprep.subr.bf16.mxu0 0
        %668 = vmatpush1.bf16.msra.mxu0 0
        %669 = vmatprep.subr.bf16.mxu0 0
        %670 = vmatpush1.bf16.msra.mxu0 0
        %671 = vmatprep.subr.bf16.mxu0 0
        %672 = vmatpush1.bf16.msra.mxu0 0
        %673 = vmatprep.subr.bf16.mxu0 0
        %674 = vmatpush1.bf16.msra.mxu0 0
        %675 = vmatprep.subr.bf16.mxu0 0
        %676 = vmatpush1.bf16.msra.mxu0 0
        %677 = vmatprep.subr.bf16.mxu0 0
        %678 = vmatpush1.bf16.msra.mxu0 0
        %679 = vmatprep.subr.bf16.mxu0 0
        %680 = vmatpush1.bf16.msra.mxu0 0
        %681 = vmatprep.subr.bf16.mxu0 0
        %682 = vmatpush1.bf16.msra.mxu0 0
        %683 = vmatprep.subr.bf16.mxu0 0
        %684 = vmatpush1.bf16.msra.mxu0 0
        %685 = vmatprep.mubr.bf16.mxu0 0
        %686 = vmatmul.mubr.bf16.gmra.mrb[0].mxu0 %v651
        %v687 = vpop.f32.mrb[0].mxu0
        %v688 = vadd.f32 %v648, %v687
        %v689 = vpop.f32.mrb[0].mxu0
        %v690 = vpop.f32.mrb[0].mxu0
        %v691 = vpop.f32.mrb[0].mxu0
        %692 = vdwg.mxu0
        %v693 = vmax.f32 %v688, 0.0
        %v694 = vpack.c.bf16 %v693, %v693
        %v695 = vld [vmem:[%s7] sm:$0xf]
        %v696 = vld [vmem:[%s7 + $0x4] sm:$0xf]
        %v697 = vld [vmem:[%s7 + $0x8] sm:$0xf]
        %v698 = vld [vmem:[%s7 + $0xc] sm:$0xf]
        %v699 = vld [vmem:[%s8] sm:$0xff]
        %v700 = vld [vmem:[%s8 + $0x8] sm:$0xff]
        %v701 = vld [vmem:[%s8 + $0x10] sm:$0xff]
        %v702 = vld [vmem:[%s8 + $0x18] sm:$0xff]
        %704 = vset.pattern.permute.xlu0 0
        %705 = vperm.xlu0 %704, %v699
        %v706 = vpop.permute.xlu0 %705
        %709 = vset.pattern.permute.xlu0 0
        %710 = vperm.xlu0 %709, %v700
        %v711 = vpop.permute.xlu0 %710
        %714 = vset.pattern.permute.xlu0 0
        %715 = vperm.xlu0 %714, %v701
        %v716 = vpop.permute.xlu0 %715
        %719 = vset.pattern.permute.xlu0 0
        %720 = vperm.xlu0 %719, %v702
        %v721 = vpop.permute.xlu0 %720
        %v727 = vunpack.c.l.b16 %v695
        %v728 = vunpack.c.l.b16 %v696
        %v729 = vunpack.c.l.b16 %v697
        %v730 = vunpack.c.l.b16 %v698
        %v731 = vpack.c.b16 %v728, %v727
        %v732 = vpack.c.b16 %v730, %v729
        %vm733 = vcmask 15360
        %v735 = vsel %vm733, %v731, 0
        %v738 = vsel %vm733, %v732, 0
        %vm740 = vcmask 1040384
        %v742 = vsel %vm740, %v694, 0
        %744 = vmatprep.subr.bf16.mxu0 0
        %745 = vmatpush1.bf16.msra.mxu0 %v742
        %746 = vmatprep.subr.bf16.mxu0 0
        %747 = vmatpush1.bf16.msra.mxu0 0
        %748 = vmatprep.subr.bf16.mxu0 0
        %749 = vmatpush1.bf16.msra.mxu0 0
        %750 = vmatprep.subr.bf16.mxu0 0
        %751 = vmatpush1.bf16.msra.mxu0 0
        %752 = vmatprep.subr.bf16.mxu0 0
        %753 = vmatpush1.bf16.msra.mxu0 0
        %754 = vmatprep.subr.bf16.mxu0 0
        %755 = vmatpush1.bf16.msra.mxu0 0
        %756 = vmatprep.subr.bf16.mxu0 0
        %757 = vmatpush1.bf16.msra.mxu0 0
        %758 = vmatprep.subr.bf16.mxu0 0
        %759 = vmatpush1.bf16.msra.mxu0 0
        %760 = vmatprep.subr.bf16.mxu0 0
        %761 = vmatpush1.bf16.msra.mxu0 0
        %762 = vmatprep.subr.bf16.mxu0 0
        %763 = vmatpush1.bf16.msra.mxu0 0
        %764 = vmatprep.subr.bf16.mxu0 0
        %765 = vmatpush1.bf16.msra.mxu0 0
        %766 = vmatprep.subr.bf16.mxu0 0
        %767 = vmatpush1.bf16.msra.mxu0 0
        %768 = vmatprep.subr.bf16.mxu0 0
        %769 = vmatpush1.bf16.msra.mxu0 0
        %770 = vmatprep.subr.bf16.mxu0 0
        %771 = vmatpush1.bf16.msra.mxu0 0
        %772 = vmatprep.subr.bf16.mxu0 0
        %773 = vmatpush1.bf16.msra.mxu0 0
        %774 = vmatprep.subr.bf16.mxu0 0
        %775 = vmatpush1.bf16.msra.mxu0 0
        %776 = vmatprep.mubr.bf16.mxu0 0
        %777 = vmatmul.mubr.bf16.gmra.mrb[0].mxu0 %v735
        %v778 = vpop.f32.mrb[0].mxu0
        %v779 = vadd.f32 %v706, %v778
        %v780 = vpop.f32.mrb[0].mxu0
        %v781 = vpop.f32.mrb[0].mxu0
        %v782 = vadd.f32 %v711, %v781
        %v783 = vpop.f32.mrb[0].mxu0
        %784 = vmatprep.mubr.bf16.mxu0 0
        %785 = vmatmul.mubr.bf16.gmra.mrb[0].mxu0 %v738
        %v786 = vpop.f32.mrb[0].mxu0
        %v787 = vadd.f32 %v716, %v786
        %v788 = vpop.f32.mrb[0].mxu0
        %v789 = vpop.f32.mrb[0].mxu0
        %v790 = vadd.f32 %v721, %v789
        %v791 = vpop.f32.mrb[0].mxu0
        %792 = vdwg.mxu0
        %v793 = vmax.f32 %v779, 0.0
        %v794 = vmax.f32 %v782, 0.0
        %v795 = vmax.f32 %v787, 0.0
        %v796 = vmax.f32 %v790, 0.0
        %v797 = vpack.c.bf16 %v794, %v793
        %v798 = vpack.c.bf16 %v796, %v795
        %v799 = vld [vmem:[%s9] sm:$0xf]
        %v800 = vld [vmem:[%s9 + $0x4] sm:$0xf]
        %v801 = vld [vmem:[%s9 + $0x8] sm:$0xf]
        %v802 = vld [vmem:[%s9 + $0xc] sm:$0xf]
        %v803 = vld [vmem:[%s10] sm:$0xff]
        %v804 = vld [vmem:[%s10 + $0x8] sm:$0xff]
        %v805 = vld [vmem:[%s10 + $0x10] sm:$0xff]
        %v806 = vld [vmem:[%s10 + $0x18] sm:$0xff]
        %808 = vset.pattern.permute.xlu0 0
        %809 = vperm.xlu0 %808, %v803
        %v810 = vpop.permute.xlu0 %809
        %813 = vset.pattern.permute.xlu0 0
        %814 = vperm.xlu0 %813, %v804
        %v815 = vpop.permute.xlu0 %814
        %818 = vset.pattern.permute.xlu0 0
        %819 = vperm.xlu0 %818, %v805
        %v820 = vpop.permute.xlu0 %819
        %823 = vset.pattern.permute.xlu0 0
        %824 = vperm.xlu0 %823, %v806
        %v825 = vpop.permute.xlu0 %824
        %v831 = vunpack.c.l.b16 %v799
        %v832 = vunpack.c.l.b16 %v800
        %v833 = vunpack.c.l.b16 %v801
        %v834 = vunpack.c.l.b16 %v802
        %v835 = vpack.c.b16 %v832, %v831
        %v836 = vpack.c.b16 %v834, %v833
        %v838 = vsel %vm581, %v835, 0
        %v841 = vsel %vm581, %v836, 0
        %843 = vmatprep.subr.bf16.mxu0 0
        %844 = vmatpush1.bf16.msra.mxu0 %v797
        %845 = vmatprep.subr.bf16.mxu0 0
        %846 = vmatpush1.bf16.msra.mxu0 %v798
        %847 = vmatprep.subr.bf16.mxu0 0
        %848 = vmatpush1.bf16.msra.mxu0 0
        %849 = vmatprep.subr.bf16.mxu0 0
        %850 = vmatpush1.bf16.msra.mxu0 0
        %851 = vmatprep.subr.bf16.mxu0 0
        %852 = vmatpush1.bf16.msra.mxu0 0
        %853 = vmatprep.subr.bf16.mxu0 0
        %854 = vmatpush1.bf16.msra.mxu0 0
        %855 = vmatprep.subr.bf16.mxu0 0
        %856 = vmatpush1.bf16.msra.mxu0 0
        %857 = vmatprep.subr.bf16.mxu0 0
        %858 = vmatpush1.bf16.msra.mxu0 0
        %859 = vmatprep.subr.bf16.mxu0 0
        %860 = vmatpush1.bf16.msra.mxu0 0
        %861 = vmatprep.subr.bf16.mxu0 0
        %862 = vmatpush1.bf16.msra.mxu0 0
        %863 = vmatprep.subr.bf16.mxu0 0
        %864 = vmatpush1.bf16.msra.mxu0 0
        %865 = vmatprep.subr.bf16.mxu0 0
        %866 = vmatpush1.bf16.msra.mxu0 0
        %867 = vmatprep.subr.bf16.mxu0 0
        %868 = vmatpush1.bf16.msra.mxu0 0
        %869 = vmatprep.subr.bf16.mxu0 0
        %870 = vmatpush1.bf16.msra.mxu0 0
        %871 = vmatprep.subr.bf16.mxu0 0
        %872 = vmatpush1.bf16.msra.mxu0 0
        %873 = vmatprep.subr.bf16.mxu0 0
        %874 = vmatpush1.bf16.msra.mxu0 0
        %875 = vmatprep.mubr.bf16.mxu0 0
        %876 = vmatmul.mubr.bf16.gmra.mrb[0].mxu0 %v838
        %v877 = vpop.f32.mrb[0].mxu0
        %v878 = vadd.f32 %v810, %v877
        %v879 = vpop.f32.mrb[0].mxu0
        %v880 = vpop.f32.mrb[0].mxu0
        %v881 = vadd.f32 %v815, %v880
        %v882 = vpop.f32.mrb[0].mxu0
        %883 = vmatprep.mubr.bf16.mxu0 0
        %884 = vmatmul.mubr.bf16.gmra.mrb[0].mxu0 %v841
        %v885 = vpop.f32.mrb[0].mxu0
        %v886 = vadd.f32 %v820, %v885
        %v887 = vpop.f32.mrb[0].mxu0
        %v888 = vpop.f32.mrb[0].mxu0
        %v889 = vadd.f32 %v825, %v888
        %v890 = vpop.f32.mrb[0].mxu0
        %891 = vdwg.mxu0
        %v892 = vmax.f32 %v878, 0.0
        %v893 = vmax.f32 %v881, 0.0
        %v894 = vmax.f32 %v886, 0.0
        %v895 = vmax.f32 %v889, 0.0
        %v896 = vpack.c.bf16 %v893, %v892
        %v897 = vpack.c.bf16 %v895, %v894
        %v898 = vld [vmem:[%s11] sm:$0x3]
        %v899 = vld [vmem:[%s12] sm:$0xf]
        %901 = vset.pattern.permute.xlu0 0
        %902 = vperm.xlu0 %901, %v899
        %v903 = vpop.permute.xlu0 %902
        %v906 = vsel %vm581, %v898, 0
        %908 = vmatprep.subr.bf16.mxu0 0
        %909 = vmatpush1.bf16.msra.mxu0 %v896
        %910 = vmatprep.subr.bf16.mxu0 0
        %911 = vmatpush1.bf16.msra.mxu0 %v897
        %912 = vmatprep.subr.bf16.mxu0 0
        %913 = vmatpush1.bf16.msra.mxu0 0
        %914 = vmatprep.subr.bf16.mxu0 0
        %915 = vmatpush1.bf16.msra.mxu0 0
        %916 = vmatprep.subr.bf16.mxu0 0
        %917 = vmatpush1.bf16.msra.mxu0 0
        %918 = vmatprep.subr.bf16.mxu0 0
        %919 = vmatpush1.bf16.msra.mxu0 0
        %920 = vmatprep.subr.bf16.mxu0 0
        %921 = vmatpush1.bf16.msra.mxu0 0
        %922 = vmatprep.subr.bf16.mxu0 0
        %923 = vmatpush1.bf16.msra.mxu0 0
        %924 = vmatprep.subr.bf16.mxu0 0
        %925 = vmatpush1.bf16.msra.mxu0 0
        %926 = vmatprep.subr.bf16.mxu0 0
        %927 = vmatpush1.bf16.msra.mxu0 0
        %928 = vmatprep.subr.bf16.mxu0 0
        %929 = vmatpush1.bf16.msra.mxu0 0
        %930 = vmatprep.subr.bf16.mxu0 0
        %931 = vmatpush1.bf16.msra.mxu0 0
        %932 = vmatprep.subr.bf16.mxu0 0
        %933 = vmatpush1.bf16.msra.mxu0 0
        %934 = vmatprep.subr.bf16.mxu0 0
        %935 = vmatpush1.bf16.msra.mxu0 0
        %936 = vmatprep.subr.bf16.mxu0 0
        %937 = vmatpush1.bf16.msra.mxu0 0
        %938 = vmatprep.subr.bf16.mxu0 0
        %939 = vmatpush1.bf16.msra.mxu0 0
        %940 = vmatprep.mubr.bf16.mxu0 0
        %941 = vmatmul.mubr.bf16.gmra.mrb[0].mxu0 %v906
        %v942 = vpop.f32.mrb[0].mxu0
        %v943 = vadd.f32 %v903, %v942
        %v944 = vpop.f32.mrb[0].mxu0
        %v945 = vpop.f32.mrb[0].mxu0
        %v946 = vpop.f32.mrb[0].mxu0
        %947 = vdwg.mxu0
        %948 = vst [vmem:[%s431] sm:$0xf] %v943
        %s949 = sand.u32 %s313, 1
        %s950 = scalar_lea.sflag [#allocation3], %s949
        %s951 = sand.u32 %s313, 1
        %s952 = smul.addr %s951, 4
        %s953 = scalar_lea.vmem [#allocation2], %s952
        // Predicated region
        $region73: #{tpu_custom_call.1} parent=71 // pred_check
          %p954 = pneg %p323
        $region74: #{tpu_custom_call.1} parent=71 // pred_check_branch
          %956 = sbr.rel (%p954) target = $region76
        $region75: #{tpu_custom_call.1} parent=71 // pred_region
          %s958 = ssub.s32 64, 64
          %959 = vsyncadd %s950, %s958
          %s960 = smul.addr %s27, 64
          %s961 = scalar_lea.hbm %s13, %s960
          %s963 = sshll.u32 %s953, 4
          %s964 = int_to_ptr.vmem [resolvable:$true] %s963
          %966 = dma.vmem_to_hbm [thread:$0]  %s964, 64, %s961, %s950
        $region76: #{tpu_custom_call.1} parent=71 // pred_fallthru
          _
      $region72: #{tpu_custom_call.1} parent=5 // pred_fallthru
        _
      %p967 = scmp.le.s32.totalorder 2, %s22
      // Predicated region
      $region77: #{tpu_custom_call.1} parent=5 // pred_check
        %p968 = pneg %p967
      $region78: #{tpu_custom_call.1} parent=5 // pred_check_branch
        %970 = sbr.rel (%p968) target = $region80
      $region79: #{tpu_custom_call.1} parent=5 // pred_region
        %s971 = ssub.s32 %s22, 2
        // Predicated region
        $region81: #{tpu_custom_call.1} parent=79 // pred_check
          %p972 = pneg %p329
        $region82: #{tpu_custom_call.1} parent=79 // pred_check_branch
          %974 = sbr.rel (%p972) target = $region84
        $region83: #{tpu_custom_call.1} parent=79 // pred_region
          %s975 = sand.u32 %s314, 1
          %s976 = scalar_lea.sflag [#allocation3], %s975
          %s977 = sand.u32 %s314, 1
          %s978 = smul.addr %s977, 4
          %s979 = scalar_lea.vmem [#allocation2], %s978
          %980 = dma.done %s976, 64
        $region84: #{tpu_custom_call.1} parent=79 // pred_fallthru
          _
      $region80: #{tpu_custom_call.1} parent=5 // pred_fallthru
        _
    $region6: #{tpu_custom_call.1} parent=1 // loop_footer
      %s26 = sadd.s32 1, %s22
    $region7: #{tpu_custom_call.1} parent=1 // loop_footer_branch
      %21 = sbr.rel target = $region3
    $region8: #{tpu_custom_call.1} parent=1 // loop_exit
      _
    %981 = vsyncpa [#allocation3], 1
    %s982 = scalar_lea.sflag [#allocation3], 1
    %983 = vsyncpa %s982, 1

</llo_original>
